<compile_context>
chip_gen: v5e
topology: v5e:2x2
jax: 0.10.0
libtpu: 0.0.40
codegen_flags: <defaults>
</compile_context>

<pallas_src>
import functools

import jax
import jax.numpy as jnp
from jax import lax
from jax.experimental import pallas as pl
from jax.experimental.pallas import tpu as pltpu


def _round_up(x, m):
    return ((x + m - 1) // m) * m


def _make_rnn_kernel(T, Bp, H, Vr, Vp):
    """Builds the kernel closure over the static dims.

    Refs:
      ids_ref : (T*Bp, 1) int32  time-major token ids, padded rows = -1
      h0_ref  : (Bp, H)   f32    initial hidden state (zero-padded rows)
      w1_ref  : (Vr+H, H) f32    rows [0,Vr)   = W_ih.T + (b_ih + b_hh)
                                 rows [Vr,Vr+H)= W_hh.T
      w2_ref  : (H+1, Vp) f32    rows [0,H)    = W_lin.T (zero-padded lanes)
                                 row  H        = b_lin   (zero-padded lanes)
      out_ref : (T*Bp+Bp, Vp) f32  rows [0,T*Bp) = logits (t-major)
                                   rows [T*Bp,)  = h_T (zero-padded lanes)
    """

    def kernel(ids_ref, h0_ref, w1_ref, w2_ref, out_ref):
        # Hoist all weight loads out of the recurrence.
        wxh = w1_ref[0:Vr, :]            # (Vr, H)  input proj (+ folded biases)
        whh = w1_ref[Vr:Vr + H, :]       # (H, H)   recurrent weights
        who = w2_ref[0:H, :]             # (H, Vp)  output head
        bo = w2_ref[H:H + 1, :]          # (1, Vp)  output bias

        # In-kernel embedding gather as a one-hot matmul:
        #   one_hot(ids) @ (W_ih.T + b_ih + b_hh)  ->  (T*Bp, H)
        # Padded rows (id = -1) match nothing -> exactly zero rows.
        ids = jnp.broadcast_to(ids_ref[...], (T * Bp, Vr))          # (T*Bp, Vr)
        vocab_iota = lax.broadcasted_iota(jnp.int32, (T * Bp, Vr), 1)
        one_hot = jnp.where(vocab_iota == ids, 1.0, 0.0)            # f32
        xproj = jnp.dot(one_hot, wxh, preferred_element_type=jnp.float32)

        # Serial recurrence, statically unrolled; h_t values stay in vregs.
        h = h0_ref[...]                                              # (Bp, H)
        hs = []
        for t in range(T):
            h = jnp.tanh(
                xproj[t * Bp:(t + 1) * Bp, :]
                + jnp.dot(h, whh, preferred_element_type=jnp.float32))
            hs.append(h)
        h_all = jnp.concatenate(hs, axis=0)                          # (T*Bp, H)

        # Deferred output head: one matmul, then a single lane-dense store of
        # [logits ; h_T(zero-padded to Vp lanes)].
        logits = jnp.dot(h_all, who, preferred_element_type=jnp.float32) + bo
        hT_pad = jnp.concatenate(
            [h, jnp.zeros((Bp, Vp - H), jnp.float32)], axis=1)       # (Bp, Vp)
        out_ref[...] = jnp.concatenate([logits, hT_pad], axis=0)

    return kernel


@jax.jit
def rnn_model_forward(inputs, state, w_ih, w_hh, b_ih, b_hh, w_lin, b_lin):
    """Pallas equivalent of RNNModel.forward(inputs, state).

    inputs: (B, T) int   state: (1, B, H) f32
    returns (output (T*B, V) f32, new_state (1, B, H) f32)
    """
    B, T = inputs.shape
    H, V = w_ih.shape

    Bp = max(8, _round_up(B, 8))      # sublane granule
    Vr = _round_up(V, 8)              # one-hot K-dim (rows of W_ih.T)
    Vp = _round_up(V, 128)            # lane granule for the logits store

    # Token ids, time-major; padded batch rows get -1 (=> all-zero one-hot).
    ids = inputs.T.astype(jnp.int32)                                  # (T, B)
    ids_p = jnp.pad(ids, ((0, 0), (0, Bp - B)),
                    constant_values=-1).reshape(T * Bp, 1)            # (T*Bp, 1)

    # Packed constant operand 1: [W_ih.T + (b_ih+b_hh) ; W_hh.T]  -> (Vr+H, H)
    bh = (b_ih + b_hh).astype(jnp.float32)
    wxh_b = jnp.pad(w_ih.T.astype(jnp.float32) + bh[None, :],
                    ((0, Vr - V), (0, 0)))                            # (Vr, H)
    w1 = jnp.concatenate([wxh_b, w_hh.T.astype(jnp.float32)], axis=0)

    # Packed constant operand 2: [W_lin.T ; b_lin] zero-padded to Vp lanes.
    who = jnp.pad(w_lin.T.astype(jnp.float32), ((0, 0), (0, Vp - V)))  # (H, Vp)
    bo = jnp.pad(b_lin.astype(jnp.float32), (0, Vp - V)).reshape(1, Vp)
    w2 = jnp.concatenate([who, bo], axis=0)                            # (H+1, Vp)

    h0_p = jnp.pad(state[0].astype(jnp.float32), ((0, Bp - B), (0, 0)))

    vmem = pltpu.MemorySpace.VMEM
    out_p = pl.pallas_call(
        _make_rnn_kernel(T, Bp, H, Vr, Vp),
        out_shape=jax.ShapeDtypeStruct((T * Bp + Bp, Vp), jnp.float32),
        in_specs=[pl.BlockSpec(memory_space=vmem)] * 4,
        out_specs=pl.BlockSpec(memory_space=vmem),
    )(ids_p, h0_p, w1, w2)

    # Strip batch / vocab padding; ordering matches Y.reshape(-1, H) (t-major).
    output = out_p[:T * Bp].reshape(T, Bp, Vp)[:, :B, :V].reshape(T * B, V)
    new_state = out_p[T * Bp:T * Bp + B, :H][None]                    # (1, B, H)
    return output, new_state


def reference_forward(inputs, state, w_ih, w_hh, b_ih, b_hh, w_lin, b_lin):
    """Pure-JAX reference mirroring the PyTorch module."""
    V = w_ih.shape[1]
    X = jax.nn.one_hot(inputs.T, V, dtype=jnp.float32)                # (T, B, V)
    hp = jax.lax.Precision.HIGHEST

    def step(h, x):
        h = jnp.tanh(jnp.dot(x, w_ih.T, precision=hp) + b_ih
                     + jnp.dot(h, w_hh.T, precision=hp) + b_hh)
        return h, h

    hT, Y = lax.scan(step, state[0].astype(jnp.float32), X)
    out = jnp.dot(Y.reshape(-1, Y.shape[-1]), w_lin.T, precision=hp) + b_lin
    return out, hT[None]


if __name__ == "__main__":
    # Small shapes consistent with the module: seq=8, batch=2, vocab=28, hidden=32
    B, T, V, H = 2, 8, 28, 32

    key = jax.random.PRNGKey(0)
    k_in, k1, k2, k3, k4, k5, k6 = jax.random.split(key, 7)

    inputs = jax.random.randint(k_in, (B, T), 0, V, dtype=jnp.int32)
    state = jnp.zeros((1, B, H), dtype=jnp.float32)  # begin_state(batch_size=B)

    # Deterministic parameter init (PyTorch-style uniform(-1/sqrt(H), 1/sqrt(H)))
    s = 1.0 / jnp.sqrt(jnp.float32(H))
    w_ih = jax.random.uniform(k1, (H, V), jnp.float32, -s, s)   # rnn.weight_ih_l0
    w_hh = jax.random.uniform(k2, (H, H), jnp.float32, -s, s)   # rnn.weight_hh_l0
    b_ih = jax.random.uniform(k3, (H,), jnp.float32, -s, s)     # rnn.bias_ih_l0
    b_hh = jax.random.uniform(k4, (H,), jnp.float32, -s, s)     # rnn.bias_hh_l0
    w_lin = jax.random.uniform(k5, (V, H), jnp.float32, -s, s)  # linear.weight
    b_lin = jax.random.uniform(k6, (V,), jnp.float32, -s, s)    # linear.bias

    out, new_state = rnn_model_forward(inputs, state, w_ih, w_hh, b_ih, b_hh,
                                       w_lin, b_lin)
    jax.block_until_ready((out, new_state))

    ref_out, ref_state = reference_forward(inputs, state, w_ih, w_hh, b_ih,
                                           b_hh, w_lin, b_lin)

    assert out.shape == (T * B, V), out.shape
    assert new_state.shape == (1, B, H), new_state.shape
    assert jnp.allclose(out, ref_out, rtol=1e-3, atol=1e-3)
    assert jnp.allclose(new_state, ref_state, rtol=1e-3, atol=1e-3)

    print("KERNEL_OK")
</pallas_src>

<mosaic_0001>
module attributes {stable_mosaic.version = 11 : i64} {
  func.func @kernel(%arg0: memref<64x1xi32, #tpu.memory_space<vmem>>, %arg1: memref<8x32xf32, #tpu.memory_space<vmem>>, %arg2: memref<64x32xf32, #tpu.memory_space<vmem>>, %arg3: memref<33x128xf32, #tpu.memory_space<vmem>>, %arg4: memref<72x128xf32, #tpu.memory_space<vmem>>) attributes {dimension_semantics = [], scalar_prefetch = 0 : i64, scratch_operands = 0 : i64, tpu.core_type = #tpu.core_type<tc>} {
    %c0 = arith.constant 0 : index
    %c0_0 = arith.constant 0 : index
    %0 = vector.load %arg2[%c0, %c0_0] : memref<64x32xf32, #tpu.memory_space<vmem>>, vector<32x32xf32>
    %c32 = arith.constant 32 : index
    %c0_1 = arith.constant 0 : index
    %1 = vector.load %arg2[%c32, %c0_1] : memref<64x32xf32, #tpu.memory_space<vmem>>, vector<32x32xf32>
    %c0_2 = arith.constant 0 : index
    %c0_3 = arith.constant 0 : index
    %2 = vector.load %arg3[%c0_2, %c0_3] : memref<33x128xf32, #tpu.memory_space<vmem>>, vector<32x128xf32>
    %c32_4 = arith.constant 32 : index
    %c0_5 = arith.constant 0 : index
    %3 = vector.load %arg3[%c32_4, %c0_5] : memref<33x128xf32, #tpu.memory_space<vmem>>, vector<1x128xf32>
    %c0_6 = arith.constant 0 : index
    %c0_7 = arith.constant 0 : index
    %4 = vector.load %arg0[%c0_6, %c0_7] : memref<64x1xi32, #tpu.memory_space<vmem>>, vector<64x1xi32>
    %5 = vector.shape_cast %4 : vector<64x1xi32> to vector<64x1xi32>
    %6 = vector.broadcast %5 : vector<64x1xi32> to vector<64x32xi32>
    %7 = tpu.iota {dimensions = array<i32: 1>} : vector<64x32xi32>
    %8 = arith.cmpi eq, %7, %6 : vector<64x32xi32>
    %cst = arith.constant 1.000000e+00 : f32
    %cst_8 = arith.constant 0.000000e+00 : f32
    %9 = vector.broadcast %cst : f32 to vector<64x32xf32>
    %10 = vector.broadcast %cst_8 : f32 to vector<64x32xf32>
    %11 = arith.select %8, %9, %10 : vector<64x32xi1>, vector<64x32xf32>
    %cst_9 = arith.constant dense<0.000000e+00> : vector<64x32xf32>
    %12 = tpu.matmul %11, %0, %cst_9 {dimension_numbers = #tpu.dot_dimension_numbers<[1], [0], [0], [1], [0, 0, 1, 1], [], []>} : vector<64x32xf32>, vector<32x32xf32>, vector<64x32xf32> -> vector<64x32xf32>
    %c0_10 = arith.constant 0 : index
    %c0_11 = arith.constant 0 : index
    %13 = vector.load %arg1[%c0_10, %c0_11] : memref<8x32xf32, #tpu.memory_space<vmem>>, vector<8x32xf32>
    %14 = vector.extract_strided_slice %12 {offsets = [0, 0], sizes = [8, 32], strides = [1, 1]} : vector<64x32xf32> to vector<8x32xf32>
    %cst_12 = arith.constant dense<0.000000e+00> : vector<8x32xf32>
    %15 = tpu.matmul %13, %1, %cst_12 {dimension_numbers = #tpu.dot_dimension_numbers<[1], [0], [0], [1], [0, 0, 1, 1], [], []>} : vector<8x32xf32>, vector<32x32xf32>, vector<8x32xf32> -> vector<8x32xf32>
    %16 = arith.addf %14, %15 : vector<8x32xf32>
    %17 = math.tanh %16 : vector<8x32xf32>
    %18 = vector.extract_strided_slice %12 {offsets = [8, 0], sizes = [8, 32], strides = [1, 1]} : vector<64x32xf32> to vector<8x32xf32>
    %cst_13 = arith.constant dense<0.000000e+00> : vector<8x32xf32>
    %19 = tpu.matmul %17, %1, %cst_13 {dimension_numbers = #tpu.dot_dimension_numbers<[1], [0], [0], [1], [0, 0, 1, 1], [], []>} : vector<8x32xf32>, vector<32x32xf32>, vector<8x32xf32> -> vector<8x32xf32>
    %20 = arith.addf %18, %19 : vector<8x32xf32>
    %21 = math.tanh %20 : vector<8x32xf32>
    %22 = vector.extract_strided_slice %12 {offsets = [16, 0], sizes = [8, 32], strides = [1, 1]} : vector<64x32xf32> to vector<8x32xf32>
    %cst_14 = arith.constant dense<0.000000e+00> : vector<8x32xf32>
    %23 = tpu.matmul %21, %1, %cst_14 {dimension_numbers = #tpu.dot_dimension_numbers<[1], [0], [0], [1], [0, 0, 1, 1], [], []>} : vector<8x32xf32>, vector<32x32xf32>, vector<8x32xf32> -> vector<8x32xf32>
    %24 = arith.addf %22, %23 : vector<8x32xf32>
    %25 = math.tanh %24 : vector<8x32xf32>
    %26 = vector.extract_strided_slice %12 {offsets = [24, 0], sizes = [8, 32], strides = [1, 1]} : vector<64x32xf32> to vector<8x32xf32>
    %cst_15 = arith.constant dense<0.000000e+00> : vector<8x32xf32>
    %27 = tpu.matmul %25, %1, %cst_15 {dimension_numbers = #tpu.dot_dimension_numbers<[1], [0], [0], [1], [0, 0, 1, 1], [], []>} : vector<8x32xf32>, vector<32x32xf32>, vector<8x32xf32> -> vector<8x32xf32>
    %28 = arith.addf %26, %27 : vector<8x32xf32>
    %29 = math.tanh %28 : vector<8x32xf32>
    %30 = vector.extract_strided_slice %12 {offsets = [32, 0], sizes = [8, 32], strides = [1, 1]} : vector<64x32xf32> to vector<8x32xf32>
    %cst_16 = arith.constant dense<0.000000e+00> : vector<8x32xf32>
    %31 = tpu.matmul %29, %1, %cst_16 {dimension_numbers = #tpu.dot_dimension_numbers<[1], [0], [0], [1], [0, 0, 1, 1], [], []>} : vector<8x32xf32>, vector<32x32xf32>, vector<8x32xf32> -> vector<8x32xf32>
    %32 = arith.addf %30, %31 : vector<8x32xf32>
    %33 = math.tanh %32 : vector<8x32xf32>
    %34 = vector.extract_strided_slice %12 {offsets = [40, 0], sizes = [8, 32], strides = [1, 1]} : vector<64x32xf32> to vector<8x32xf32>
    %cst_17 = arith.constant dense<0.000000e+00> : vector<8x32xf32>
    %35 = tpu.matmul %33, %1, %cst_17 {dimension_numbers = #tpu.dot_dimension_numbers<[1], [0], [0], [1], [0, 0, 1, 1], [], []>} : vector<8x32xf32>, vector<32x32xf32>, vector<8x32xf32> -> vector<8x32xf32>
    %36 = arith.addf %34, %35 : vector<8x32xf32>
    %37 = math.tanh %36 : vector<8x32xf32>
    %38 = vector.extract_strided_slice %12 {offsets = [48, 0], sizes = [8, 32], strides = [1, 1]} : vector<64x32xf32> to vector<8x32xf32>
    %cst_18 = arith.constant dense<0.000000e+00> : vector<8x32xf32>
    %39 = tpu.matmul %37, %1, %cst_18 {dimension_numbers = #tpu.dot_dimension_numbers<[1], [0], [0], [1], [0, 0, 1, 1], [], []>} : vector<8x32xf32>, vector<32x32xf32>, vector<8x32xf32> -> vector<8x32xf32>
    %40 = arith.addf %38, %39 : vector<8x32xf32>
    %41 = math.tanh %40 : vector<8x32xf32>
    %42 = vector.extract_strided_slice %12 {offsets = [56, 0], sizes = [8, 32], strides = [1, 1]} : vector<64x32xf32> to vector<8x32xf32>
    %cst_19 = arith.constant dense<0.000000e+00> : vector<8x32xf32>
    %43 = tpu.matmul %41, %1, %cst_19 {dimension_numbers = #tpu.dot_dimension_numbers<[1], [0], [0], [1], [0, 0, 1, 1], [], []>} : vector<8x32xf32>, vector<32x32xf32>, vector<8x32xf32> -> vector<8x32xf32>
    %44 = arith.addf %42, %43 : vector<8x32xf32>
    %45 = math.tanh %44 : vector<8x32xf32>
    %46 = tpu.concatenate %17, %21, %25, %29, %33, %37, %41, %45 in 0 : vector<8x32xf32>, vector<8x32xf32>, vector<8x32xf32>, vector<8x32xf32>, vector<8x32xf32>, vector<8x32xf32>, vector<8x32xf32>, vector<8x32xf32> -> vector<64x32xf32>
    %cst_20 = arith.constant dense<0.000000e+00> : vector<64x128xf32>
    %47 = tpu.matmul %46, %2, %cst_20 {dimension_numbers = #tpu.dot_dimension_numbers<[1], [0], [0], [1], [0, 0, 1, 1], [], []>} : vector<64x32xf32>, vector<32x128xf32>, vector<64x128xf32> -> vector<64x128xf32>
    %48 = vector.broadcast %3 : vector<1x128xf32> to vector<64x128xf32>
    %49 = arith.addf %47, %48 : vector<64x128xf32>
    %cst_21 = arith.constant 0.000000e+00 : f32
    %50 = vector.broadcast %cst_21 : f32 to vector<8x96xf32>
    %51 = tpu.concatenate %45, %50 in 1 : vector<8x32xf32>, vector<8x96xf32> -> vector<8x128xf32>
    %52 = tpu.concatenate %49, %51 in 0 : vector<64x128xf32>, vector<8x128xf32> -> vector<72x128xf32>
    %c0_22 = arith.constant 0 : index
    %c0_23 = arith.constant 0 : index
    %53 = vector.load %arg4[%c0_22, %c0_23] : memref<72x128xf32, #tpu.memory_space<vmem>>, vector<72x128xf32>
    tpu.vector_store %arg4[%c0_22, %c0_23], %52 {strides = array<i32>} : memref<72x128xf32, #tpu.memory_space<vmem>>, vector<72x128xf32>,
    return
  }
}

</mosaic_0001>

<llo_original>
// kernel: rnn_model_forward.1
$region0: #{rnn_model_forward.1}
  #allocation0 [shape = 'u32[]', space=smem, size = 0x4, offset = 0x4, fixed_abs, tag = 'smem constant byte address 0x4 - core index']
  #allocation1 [shape = 'u32[72,128]{1,0:T(1,128)}', space=vmem, size = 0x9000, scoped, tag = 'internal scratch']
  %s0 = inlined_call_operand.vmem [shape: s32[64,1], index: 0, kind: input, shape index: {}]
  %s1 = inlined_call_operand.vmem [shape: f32[8,32], index: 1, kind: input, shape index: {}]
  %s2 = inlined_call_operand.vmem [shape: f32[64,32], index: 2, kind: input, shape index: {}]
  %s3 = inlined_call_operand.vmem [shape: f32[33,128], index: 3, kind: input, shape index: {}]
  %s4 = inlined_call_operand.vmem [shape: f32[72,128], index: 4, kind: output, shape index: {}]
  %s5 = sld [smem:[#allocation0]]
  $region26: #{rnn_model_forward.1} parent=0
    _
  %s7 = ssub.s32 1, %s5
  %s8 = scalar_select 0, %s7, %s5
  // Predicated region
  $region2: #{rnn_model_forward.1} parent=0 // pred_check
    _
  $region3: #{rnn_model_forward.1} parent=0 // pred_check_branch
    %10 = sbr.rel (0) target = $region5
  $region4: #{rnn_model_forward.1} parent=0 // pred_region
    _
  $region5: #{rnn_model_forward.1} parent=0 // pred_fallthru
    _
  // Predicated region
  $region6: #{rnn_model_forward.1} parent=0 // pred_check
    _
  $region7: #{rnn_model_forward.1} parent=0 // pred_check_branch
    %12 = sbr.rel (0) target = $region9
  $region8: #{rnn_model_forward.1} parent=0 // pred_region
    _
  $region9: #{rnn_model_forward.1} parent=0 // pred_fallthru
    _
  // Predicated region
  $region10: #{rnn_model_forward.1} parent=0 // pred_check
    _
  $region11: #{rnn_model_forward.1} parent=0 // pred_check_branch
    %14 = sbr.rel (0) target = $region13
  $region12: #{rnn_model_forward.1} parent=0 // pred_region
    _
  $region13: #{rnn_model_forward.1} parent=0 // pred_fallthru
    _
  // Predicated region
  $region14: #{rnn_model_forward.1} parent=0 // pred_check
    _
  $region15: #{rnn_model_forward.1} parent=0 // pred_check_branch
    %16 = sbr.rel (0) target = $region17
  $region16: #{rnn_model_forward.1} parent=0 // pred_region
    _
  $region17: #{rnn_model_forward.1} parent=0 // pred_fallthru
    _
  %v17 = vld [vmem:[%s2] sm:$0xff]
  %v18 = vld [vmem:[%s2 + $0x8] sm:$0xff]
  %v19 = vld [vmem:[%s2 + $0x10] sm:$0xff]
  %v20 = vld [vmem:[%s2 + $0x18] sm:$0xff]
  %v21 = vld [vmem:[%s2 + $0x20] sm:$0xff]
  %v22 = vld [vmem:[%s2 + $0x28] sm:$0xff]
  %v23 = vld [vmem:[%s2 + $0x30] sm:$0xff]
  %v24 = vld [vmem:[%s2 + $0x38] sm:$0xff]
  %v25 = vld [vmem:[%s3] sm:$0xff]
  %v26 = vld [vmem:[%s3 + $0x8] sm:$0xff]
  %v27 = vld [vmem:[%s3 + $0x10] sm:$0xff]
  %v28 = vld [vmem:[%s3 + $0x18] sm:$0xff]
  %v29 = vld [vmem:[%s3 + $0x20] sm:$0x1]
  %v30 = vld [vmem:[%s0] sm:$0xff]
  %v31 = vld [vmem:[%s0 + $0x8] sm:$0xff]
  %v32 = vld [vmem:[%s0 + $0x10] sm:$0xff]
  %v33 = vld [vmem:[%s0 + $0x18] sm:$0xff]
  %v34 = vld [vmem:[%s0 + $0x20] sm:$0xff]
  %v35 = vld [vmem:[%s0 + $0x28] sm:$0xff]
  %v36 = vld [vmem:[%s0 + $0x30] sm:$0xff]
  %v37 = vld [vmem:[%s0 + $0x38] sm:$0xff]
  %38 = vset.pattern.permute.xlu0 0
  %39 = vperm.xlu0 %38, %v30
  %v40 = vpop.permute.xlu0 %39
  %41 = vset.pattern.permute.xlu0 0
  %42 = vperm.xlu0 %41, %v31
  %v43 = vpop.permute.xlu0 %42
  %44 = vset.pattern.permute.xlu0 0
  %45 = vperm.xlu0 %44, %v32
  %v46 = vpop.permute.xlu0 %45
  %47 = vset.pattern.permute.xlu0 0
  %48 = vperm.xlu0 %47, %v33
  %v49 = vpop.permute.xlu0 %48
  %50 = vset.pattern.permute.xlu0 0
  %51 = vperm.xlu0 %50, %v34
  %v52 = vpop.permute.xlu0 %51
  %53 = vset.pattern.permute.xlu0 0
  %54 = vperm.xlu0 %53, %v35
  %v55 = vpop.permute.xlu0 %54
  %56 = vset.pattern.permute.xlu0 0
  %57 = vperm.xlu0 %56, %v36
  %v58 = vpop.permute.xlu0 %57
  %59 = vset.pattern.permute.xlu0 0
  %60 = vperm.xlu0 %59, %v37
  %v61 = vpop.permute.xlu0 %60
  %v62 = vlaneseq
  %v63 = vand.u32 %v62, 127
  %vm64 = vcmp.eq.s32.totalorder %v63, %v40
  %vm65 = vcmp.eq.s32.totalorder %v63, %v43
  %vm66 = vcmp.eq.s32.totalorder %v63, %v46
  %vm67 = vcmp.eq.s32.totalorder %v63, %v49
  %vm68 = vcmp.eq.s32.totalorder %v63, %v52
  %vm69 = vcmp.eq.s32.totalorder %v63, %v55
  %vm70 = vcmp.eq.s32.totalorder %v63, %v58
  %vm71 = vcmp.eq.s32.totalorder %v63, %v61
  %v72 = vsel %vm64, 1.0, 0.0
  %v73 = vsel %vm65, 1.0, 0.0
  %v74 = vsel %vm66, 1.0, 0.0
  %v75 = vsel %vm67, 1.0, 0.0
  %v76 = vsel %vm68, 1.0, 0.0
  %v77 = vsel %vm69, 1.0, 0.0
  %v78 = vsel %vm70, 1.0, 0.0
  %v79 = vsel %vm71, 1.0, 0.0
  %vm80 = vcmask 261120
  %v82 = vsel %vm80, %v72, 0
  %v85 = vsel %vm80, %v73, 0
  %v88 = vsel %vm80, %v74, 0
  %v91 = vsel %vm80, %v75, 0
  %v94 = vsel %vm80, %v76, 0
  %v97 = vsel %vm80, %v77, 0
  %v100 = vsel %vm80, %v78, 0
  %v103 = vsel %vm80, %v79, 0
  %105 = vmatpush.msra.mxu0 0.0
  %106 = vmatpush.msra.mxu0 0.0
  %107 = vmatpush.msra.mxu0 0.0
  %108 = vmatpush.msra.mxu0 0.0
  %109 = vmatpush.msra.mxu0 0.0
  %110 = vmatpush.msra.mxu0 0.0
  %111 = vmatpush.msra.mxu0 0.0
  %112 = vmatpush.msra.mxu0 0.0
  %113 = vmatpush.msra.mxu0 0.0
  %114 = vmatpush.msra.mxu0 0.0
  %115 = vmatpush.msra.mxu0 0.0
  %116 = vmatpush.msra.mxu0 0.0
  %117 = vmatpush.msra.mxu0 %v20
  %118 = vmatpush.msra.mxu0 %v19
  %119 = vmatpush.msra.mxu0 %v18
  %120 = vmatpush.msra.mxu0 %v17
  %121 = vmatmul.f32.gmra.mxu0 %v82
  %v122 = vpop.f32.mrf.mxu0
  %v123 = vadd.f32 0.0, %v122
  %124 = vmatmul.f32.gmra.mxu0 %v85
  %v125 = vpop.f32.mrf.mxu0
  %v126 = vadd.f32 0.0, %v125
  %127 = vmatmul.f32.gmra.mxu0 %v88
  %v128 = vpop.f32.mrf.mxu0
  %v129 = vadd.f32 0.0, %v128
  %130 = vmatmul.f32.gmra.mxu0 %v91
  %v131 = vpop.f32.mrf.mxu0
  %v132 = vadd.f32 0.0, %v131
  %133 = vmatmul.f32.gmra.mxu0 %v94
  %v134 = vpop.f32.mrf.mxu0
  %v135 = vadd.f32 0.0, %v134
  %136 = vmatmul.f32.gmra.mxu0 %v97
  %v137 = vpop.f32.mrf.mxu0
  %v138 = vadd.f32 0.0, %v137
  %139 = vmatmul.f32.gmra.mxu0 %v100
  %v140 = vpop.f32.mrf.mxu0
  %v141 = vadd.f32 0.0, %v140
  %142 = vmatmul.f32.gmra.mxu0 %v103
  %v143 = vpop.f32.mrf.mxu0
  %v144 = vadd.f32 0.0, %v143
  %145 = vdwg.mxu0
  %v146 = vld [vmem:[%s1] sm:$0xff]
  %v148 = vsel %vm80, %v146, 0
  %150 = vmatpush.msra.mxu0 0.0
  %151 = vmatpush.msra.mxu0 0.0
  %152 = vmatpush.msra.mxu0 0.0
  %153 = vmatpush.msra.mxu0 0.0
  %154 = vmatpush.msra.mxu0 0.0
  %155 = vmatpush.msra.mxu0 0.0
  %156 = vmatpush.msra.mxu0 0.0
  %157 = vmatpush.msra.mxu0 0.0
  %158 = vmatpush.msra.mxu0 0.0
  %159 = vmatpush.msra.mxu0 0.0
  %160 = vmatpush.msra.mxu0 0.0
  %161 = vmatpush.msra.mxu0 0.0
  %162 = vmatpush.msra.mxu0 %v24
  %163 = vmatpush.msra.mxu0 %v23
  %164 = vmatpush.msra.mxu0 %v22
  %165 = vmatpush.msra.mxu0 %v21
  %166 = vmatmul.f32.gmra.mxu0 %v148
  %v167 = vpop.f32.mrf.mxu0
  %v168 = vadd.f32 0.0, %v167
  %169 = vdwg.mxu0
  %v170 = vadd.f32 %v123, %v168
  %v171 = vtanh.pop %v170
  %v173 = vsel %vm80, %v171, 0
  %175 = vmatpush.msra.mxu0 0.0
  %176 = vmatpush.msra.mxu0 0.0
  %177 = vmatpush.msra.mxu0 0.0
  %178 = vmatpush.msra.mxu0 0.0
  %179 = vmatpush.msra.mxu0 0.0
  %180 = vmatpush.msra.mxu0 0.0
  %181 = vmatpush.msra.mxu0 0.0
  %182 = vmatpush.msra.mxu0 0.0
  %183 = vmatpush.msra.mxu0 0.0
  %184 = vmatpush.msra.mxu0 0.0
  %185 = vmatpush.msra.mxu0 0.0
  %186 = vmatpush.msra.mxu0 0.0
  %187 = vmatpush.msra.mxu0 %v24
  %188 = vmatpush.msra.mxu0 %v23
  %189 = vmatpush.msra.mxu0 %v22
  %190 = vmatpush.msra.mxu0 %v21
  %191 = vmatmul.f32.gmra.mxu0 %v173
  %v192 = vpop.f32.mrf.mxu0
  %v193 = vadd.f32 0.0, %v192
  %194 = vdwg.mxu0
  %v195 = vadd.f32 %v126, %v193
  %v196 = vtanh.pop %v195
  %v198 = vsel %vm80, %v196, 0
  %200 = vmatpush.msra.mxu0 0.0
  %201 = vmatpush.msra.mxu0 0.0
  %202 = vmatpush.msra.mxu0 0.0
  %203 = vmatpush.msra.mxu0 0.0
  %204 = vmatpush.msra.mxu0 0.0
  %205 = vmatpush.msra.mxu0 0.0
  %206 = vmatpush.msra.mxu0 0.0
  %207 = vmatpush.msra.mxu0 0.0
  %208 = vmatpush.msra.mxu0 0.0
  %209 = vmatpush.msra.mxu0 0.0
  %210 = vmatpush.msra.mxu0 0.0
  %211 = vmatpush.msra.mxu0 0.0
  %212 = vmatpush.msra.mxu0 %v24
  %213 = vmatpush.msra.mxu0 %v23
  %214 = vmatpush.msra.mxu0 %v22
  %215 = vmatpush.msra.mxu0 %v21
  %216 = vmatmul.f32.gmra.mxu0 %v198
  %v217 = vpop.f32.mrf.mxu0
  %v218 = vadd.f32 0.0, %v217
  %219 = vdwg.mxu0
  %v220 = vadd.f32 %v129, %v218
  %v221 = vtanh.pop %v220
  %v223 = vsel %vm80, %v221, 0
  %225 = vmatpush.msra.mxu0 0.0
  %226 = vmatpush.msra.mxu0 0.0
  %227 = vmatpush.msra.mxu0 0.0
  %228 = vmatpush.msra.mxu0 0.0
  %229 = vmatpush.msra.mxu0 0.0
  %230 = vmatpush.msra.mxu0 0.0
  %231 = vmatpush.msra.mxu0 0.0
  %232 = vmatpush.msra.mxu0 0.0
  %233 = vmatpush.msra.mxu0 0.0
  %234 = vmatpush.msra.mxu0 0.0
  %235 = vmatpush.msra.mxu0 0.0
  %236 = vmatpush.msra.mxu0 0.0
  %237 = vmatpush.msra.mxu0 %v24
  %238 = vmatpush.msra.mxu0 %v23
  %239 = vmatpush.msra.mxu0 %v22
  %240 = vmatpush.msra.mxu0 %v21
  %241 = vmatmul.f32.gmra.mxu0 %v223
  %v242 = vpop.f32.mrf.mxu0
  %v243 = vadd.f32 0.0, %v242
  %244 = vdwg.mxu0
  %v245 = vadd.f32 %v132, %v243
  %v246 = vtanh.pop %v245
  %v248 = vsel %vm80, %v246, 0
  %250 = vmatpush.msra.mxu0 0.0
  %251 = vmatpush.msra.mxu0 0.0
  %252 = vmatpush.msra.mxu0 0.0
  %253 = vmatpush.msra.mxu0 0.0
  %254 = vmatpush.msra.mxu0 0.0
  %255 = vmatpush.msra.mxu0 0.0
  %256 = vmatpush.msra.mxu0 0.0
  %257 = vmatpush.msra.mxu0 0.0
  %258 = vmatpush.msra.mxu0 0.0
  %259 = vmatpush.msra.mxu0 0.0
  %260 = vmatpush.msra.mxu0 0.0
  %261 = vmatpush.msra.mxu0 0.0
  %262 = vmatpush.msra.mxu0 %v24
  %263 = vmatpush.msra.mxu0 %v23
  %264 = vmatpush.msra.mxu0 %v22
  %265 = vmatpush.msra.mxu0 %v21
  %266 = vmatmul.f32.gmra.mxu0 %v248
  %v267 = vpop.f32.mrf.mxu0
  %v268 = vadd.f32 0.0, %v267
  %269 = vdwg.mxu0
  %v270 = vadd.f32 %v135, %v268
  %v271 = vtanh.pop %v270
  %v273 = vsel %vm80, %v271, 0
  %275 = vmatpush.msra.mxu0 0.0
  %276 = vmatpush.msra.mxu0 0.0
  %277 = vmatpush.msra.mxu0 0.0
  %278 = vmatpush.msra.mxu0 0.0
  %279 = vmatpush.msra.mxu0 0.0
  %280 = vmatpush.msra.mxu0 0.0
  %281 = vmatpush.msra.mxu0 0.0
  %282 = vmatpush.msra.mxu0 0.0
  %283 = vmatpush.msra.mxu0 0.0
  %284 = vmatpush.msra.mxu0 0.0
  %285 = vmatpush.msra.mxu0 0.0
  %286 = vmatpush.msra.mxu0 0.0
  %287 = vmatpush.msra.mxu0 %v24
  %288 = vmatpush.msra.mxu0 %v23
  %289 = vmatpush.msra.mxu0 %v22
  %290 = vmatpush.msra.mxu0 %v21
  %291 = vmatmul.f32.gmra.mxu0 %v273
  %v292 = vpop.f32.mrf.mxu0
  %v293 = vadd.f32 0.0, %v292
  %294 = vdwg.mxu0
  %v295 = vadd.f32 %v138, %v293
  %v296 = vtanh.pop %v295
  %v298 = vsel %vm80, %v296, 0
  %300 = vmatpush.msra.mxu0 0.0
  %301 = vmatpush.msra.mxu0 0.0
  %302 = vmatpush.msra.mxu0 0.0
  %303 = vmatpush.msra.mxu0 0.0
  %304 = vmatpush.msra.mxu0 0.0
  %305 = vmatpush.msra.mxu0 0.0
  %306 = vmatpush.msra.mxu0 0.0
  %307 = vmatpush.msra.mxu0 0.0
  %308 = vmatpush.msra.mxu0 0.0
  %309 = vmatpush.msra.mxu0 0.0
  %310 = vmatpush.msra.mxu0 0.0
  %311 = vmatpush.msra.mxu0 0.0
  %312 = vmatpush.msra.mxu0 %v24
  %313 = vmatpush.msra.mxu0 %v23
  %314 = vmatpush.msra.mxu0 %v22
  %315 = vmatpush.msra.mxu0 %v21
  %316 = vmatmul.f32.gmra.mxu0 %v298
  %v317 = vpop.f32.mrf.mxu0
  %v318 = vadd.f32 0.0, %v317
  %319 = vdwg.mxu0
  %v320 = vadd.f32 %v141, %v318
  %v321 = vtanh.pop %v320
  %v323 = vsel %vm80, %v321, 0
  %325 = vmatpush.msra.mxu0 0.0
  %326 = vmatpush.msra.mxu0 0.0
  %327 = vmatpush.msra.mxu0 0.0
  %328 = vmatpush.msra.mxu0 0.0
  %329 = vmatpush.msra.mxu0 0.0
  %330 = vmatpush.msra.mxu0 0.0
  %331 = vmatpush.msra.mxu0 0.0
  %332 = vmatpush.msra.mxu0 0.0
  %333 = vmatpush.msra.mxu0 0.0
  %334 = vmatpush.msra.mxu0 0.0
  %335 = vmatpush.msra.mxu0 0.0
  %336 = vmatpush.msra.mxu0 0.0
  %337 = vmatpush.msra.mxu0 %v24
  %338 = vmatpush.msra.mxu0 %v23
  %339 = vmatpush.msra.mxu0 %v22
  %340 = vmatpush.msra.mxu0 %v21
  %341 = vmatmul.f32.gmra.mxu0 %v323
  %v342 = vpop.f32.mrf.mxu0
  %v343 = vadd.f32 0.0, %v342
  %344 = vdwg.mxu0
  %v345 = vadd.f32 %v144, %v343
  %v346 = vtanh.pop %v345
  %v347 = vperm.slane %v29, 0
  %v349 = vsel %vm80, %v346, 0
  %351 = vmatpush.msra.mxu0 0.0
  %352 = vmatpush.msra.mxu0 0.0
  %353 = vmatpush.msra.mxu0 0.0
  %354 = vmatpush.msra.mxu0 0.0
  %355 = vmatpush.msra.mxu0 0.0
  %356 = vmatpush.msra.mxu0 0.0
  %357 = vmatpush.msra.mxu0 0.0
  %358 = vmatpush.msra.mxu0 0.0
  %359 = vmatpush.msra.mxu0 0.0
  %360 = vmatpush.msra.mxu0 0.0
  %361 = vmatpush.msra.mxu0 0.0
  %362 = vmatpush.msra.mxu0 0.0
  %363 = vmatpush.msra.mxu0 %v28
  %364 = vmatpush.msra.mxu0 %v27
  %365 = vmatpush.msra.mxu0 %v26
  %366 = vmatpush.msra.mxu0 %v25
  %367 = vmatmul.f32.gmra.mxu0 %v173
  %v368 = vpop.f32.mrf.mxu0
  %v369 = vadd.f32 %v347, %v368
  %370 = vmatmul.f32.gmra.mxu0 %v198
  %v371 = vpop.f32.mrf.mxu0
  %v372 = vadd.f32 %v347, %v371
  %373 = vmatmul.f32.gmra.mxu0 %v223
  %v374 = vpop.f32.mrf.mxu0
  %v375 = vadd.f32 %v347, %v374
  %376 = vmatmul.f32.gmra.mxu0 %v248
  %v377 = vpop.f32.mrf.mxu0
  %v378 = vadd.f32 %v347, %v377
  %379 = vmatmul.f32.gmra.mxu0 %v273
  %v380 = vpop.f32.mrf.mxu0
  %v381 = vadd.f32 %v347, %v380
  %382 = vmatmul.f32.gmra.mxu0 %v298
  %v383 = vpop.f32.mrf.mxu0
  %v384 = vadd.f32 %v347, %v383
  %385 = vmatmul.f32.gmra.mxu0 %v323
  %v386 = vpop.f32.mrf.mxu0
  %v387 = vadd.f32 %v347, %v386
  %388 = vmatmul.f32.gmra.mxu0 %v349
  %v389 = vpop.f32.mrf.mxu0
  %v390 = vadd.f32 %v347, %v389
  %391 = vdwg.mxu0
  %v392 = vsel %vm80, %v346, 0.0
  %393 = vst [vmem:[%s4] sm:$0xff] %v369
  %394 = vst [vmem:[%s4 + $0x8] sm:$0xff] %v372
  %395 = vst [vmem:[%s4 + $0x10] sm:$0xff] %v375
  %396 = vst [vmem:[%s4 + $0x18] sm:$0xff] %v378
  %397 = vst [vmem:[%s4 + $0x20] sm:$0xff] %v381
  %398 = vst [vmem:[%s4 + $0x28] sm:$0xff] %v384
  %399 = vst [vmem:[%s4 + $0x30] sm:$0xff] %v387
  %400 = vst [vmem:[%s4 + $0x38] sm:$0xff] %v390
  %401 = vst [vmem:[%s4 + $0x40] sm:$0xff] %v392
  // Predicated region
  $region18: #{rnn_model_forward.1} parent=0 // pred_check
    _
  $region19: #{rnn_model_forward.1} parent=0 // pred_check_branch
    %403 = sbr.rel (0) target = $region21
  $region20: #{rnn_model_forward.1} parent=0 // pred_region
    _
  $region21: #{rnn_model_forward.1} parent=0 // pred_fallthru
    _
  // Predicated region
  $region22: #{rnn_model_forward.1} parent=0 // pred_check
    _
  $region23: #{rnn_model_forward.1} parent=0 // pred_check_branch
    %405 = sbr.rel (0) target = $region25
  $region24: #{rnn_model_forward.1} parent=0 // pred_region
    _
  $region25: #{rnn_model_forward.1} parent=0 // pred_fallthru
    _

</llo_original>
